<compile_context>
chip_gen: v6e
topology: v6e:2x2x1
jax: 0.10.0
libtpu: 0.0.40
codegen_flags: <defaults>
</compile_context>

<pallas_src>
import functools

import jax
import jax.numpy as jnp
from jax import lax
from jax.experimental import pallas as pl
from jax.experimental.pallas import tpu as pltpu


def _round_down(x: int, m: int) -> int:
    return (x // m) * m


def _round_up(x: int, m: int) -> int:
    return ((x + m - 1) // m) * m


def _vmem_capacity_bytes() -> int:
    """Per-core VMEM capacity; conservative 64 MiB fallback (v7x per-TC)."""
    try:
        cap = int(pltpu.get_tpu_info().vmem_capacity_bytes)
        if cap > 0:
            return cap
    except Exception:
        pass
    return 64 * 1024 * 1024


def _z0_kernel(x_ref, w_ref, o_ref, *, split_store: bool):
    # x_ref : [TB, dx]     (VMEM) batch tile of x0
    # w_ref : [dz-dx, dx]  (VMEM) nn.Linear weight (PyTorch layout), resident
    # o_ref : [TB, dz]     (VMEM) output tile z0 = [x0, x0 @ W^T]
    x = x_ref[...]
    dx = x.shape[1]

    # x0 @ W^T on the MXU: contract the feature (lane) axis of x with the
    # feature axis of W -- no transpose of W anywhere.
    y = lax.dot_general(
        x,
        w_ref[...],
        dimension_numbers=(((1,), (1,)), ((), ())),
        preferred_element_type=jnp.float32,
    ).astype(o_ref.dtype)

    if split_store:
        # dx is a multiple of 128: both sub-stores are lane-dense.
        o_ref[:, :dx] = x.astype(o_ref.dtype)
        o_ref[:, dx:] = y
    else:
        # Lane-misaligned split would emit two masked vst.msk + a lane rotate;
        # assemble the full row in vregs (XLU has slack) and store once.
        o_ref[...] = jnp.concatenate([x.astype(o_ref.dtype), y], axis=1)


def _pick_batch_tile(B: int, dx: int, dz: int, itemsize: int,
                     weight_bytes: int, vmem_cap: int) -> int:
    if B <= 8:
        return B  # full-dim block is always legal
    budget = vmem_cap // 2                      # ~50% of per-core VMEM
    per_row = (2 * dx + 2 * dz) * itemsize      # double-buffered x-in + z-out
    avail = max(budget - weight_bytes, 8 * per_row)
    tb = max(avail // per_row, 8)
    tb = min(tb, 8192)                          # diminishing returns beyond this
    # Guarantee >= 2 grid steps so the "parallel" axis spans both v7x TCs.
    tb = min(tb, _round_up(pl.cdiv(B, 2), 8), _round_up(B, 8))
    return int(max(_round_down(tb, 8), 8))


def z0_forward(x0: jax.Array, w: jax.Array, *, force_pallas: bool = False) -> jax.Array:
    """x0: [B, dx]; w: [dz-dx, dx] (PyTorch nn.Linear weight layout)."""
    B, dx = x0.shape
    d_pred, dx_w = w.shape
    assert dx == dx_w, "weight / input feature-dim mismatch"
    dz = dx + d_pred
    itemsize = jnp.dtype(x0.dtype).itemsize

    # Small-shape bypass: launch + DMA setup dominate and the custom call
    # blocks fusion with neighbors; plain XLA is strictly better here.
    if not force_pallas and B * dz * itemsize < (1 << 20):
        return jnp.concatenate([x0, (x0 @ w.T).astype(x0.dtype)], axis=1)

    weight_bytes = d_pred * dx * jnp.dtype(w.dtype).itemsize
    vmem_cap = _vmem_capacity_bytes()
    TB = _pick_batch_tile(B, dx, dz, itemsize, weight_bytes, vmem_cap)
    grid = (pl.cdiv(B, TB),)

    # Double-buffered x-in / z-out tiles + single-buffered resident weight.
    vmem_need = (2 * TB * dx + 2 * TB * dz) * itemsize + 2 * weight_bytes
    vmem_limit = int(min(vmem_need + (4 << 20), vmem_cap))

    cost = pl.CostEstimate(
        flops=2 * B * dx * d_pred,
        transcendentals=0,
        bytes_accessed=itemsize * (B * dx + B * dz) + weight_bytes,
    )

    kernel = functools.partial(_z0_kernel, split_store=(dx % 128 == 0))

    def build(weight_single_buffered: bool):
        if weight_single_buffered:
            w_spec = pl.BlockSpec((d_pred, dx), lambda i: (0, 0),
                                  pipeline_mode=pl.Buffered(1))
        else:
            w_spec = pl.BlockSpec((d_pred, dx), lambda i: (0, 0))
        return pl.pallas_call(
            kernel,
            out_shape=jax.ShapeDtypeStruct((B, dz), x0.dtype),
            grid=grid,
            in_specs=[
                pl.BlockSpec((TB, dx), lambda i: (i, 0)),  # batch-tiled x0
                w_spec,                                     # resident weight
            ],
            out_specs=pl.BlockSpec((TB, dz), lambda i: (i, 0)),
            compiler_params=pltpu.CompilerParams(
                dimension_semantics=("parallel",),
                vmem_limit_bytes=vmem_limit,
            ),
            cost_estimate=cost,
        )

    try:
        return build(True)(x0, w)
    except Exception:
        # Fallback if single-buffered pipeline_mode isn't supported by this jax.
        return build(False)(x0, w)


if __name__ == "__main__":
    key = jax.random.PRNGKey(0)
    kx, kw, kx2 = jax.random.split(key, 3)

    # Small, forward-implied shapes: x0 is [batch, dx]; z0 is [batch, dz].
    B, dx, dz = 8, 16, 48  # MLP predicts dz - dx = 32 extra latent states
    x0 = jax.random.normal(kx, (B, dx), dtype=jnp.float32)
    # Deterministic init mimicking nn.Linear default (uniform in +-1/sqrt(dx)).
    bound = 1.0 / jnp.sqrt(jnp.float32(dx))
    w = jax.random.uniform(kw, (dz - dx, dx), dtype=jnp.float32,
                           minval=-bound, maxval=bound)

    # 1) Exercise the Pallas kernel at the small test shape.
    z0 = z0_forward(x0, w, force_pallas=True)
    jax.block_until_ready(z0)
    ref = jnp.concatenate([x0, x0 @ w.T], axis=1)
    assert z0.shape == (B, dz)
    assert jnp.allclose(z0, ref, atol=1e-5, rtol=1e-5)

    # 2) Multi-step grid with a partial last batch tile (exercises tiling path).
    B2 = 1000
    x0b = jax.random.normal(kx2, (B2, dx), dtype=jnp.float32)
    z0b = z0_forward(x0b, w, force_pallas=True)
    jax.block_until_ready(z0b)
    refb = jnp.concatenate([x0b, x0b @ w.T], axis=1)
    assert z0b.shape == (B2, dz)
    assert jnp.allclose(z0b, refb, atol=1e-5, rtol=1e-5)

    print("KERNEL_OK")
</pallas_src>

<mosaic_0001>
module attributes {stable_mosaic.version = 11 : i64} {
  func.func @_z0_kernel(%arg0: i32, %arg1: memref<8x16xf32, #tpu.memory_space<vmem>>, %arg2: memref<32x16xf32, #tpu.memory_space<vmem>>, %arg3: memref<8x48xf32, #tpu.memory_space<vmem>>) attributes {dimension_semantics = [#tpu.dimension_semantics<parallel>], iteration_bounds = array<i64: 1>, scalar_prefetch = 0 : i64, scratch_operands = 0 : i64, tpu.core_type = #tpu.core_type<tc>, window_params = [{transform_indices = @transform_0, window_bounds = array<i64: 8, 16>}, {pipeline_mode = #tpu.pipeline_mode<synchronous>, transform_indices = @transform_1, window_bounds = array<i64: 32, 16>}, {transform_indices = @transform_2, window_bounds = array<i64: 8, 48>}]} {
    %c0 = arith.constant 0 : index
    %c0_0 = arith.constant 0 : index
    %0 = vector.load %arg1[%c0, %c0_0] : memref<8x16xf32, #tpu.memory_space<vmem>>, vector<8x16xf32>
    %c0_1 = arith.constant 0 : index
    %c0_2 = arith.constant 0 : index
    %1 = vector.load %arg2[%c0_1, %c0_2] : memref<32x16xf32, #tpu.memory_space<vmem>>, vector<32x16xf32>
    %cst = arith.constant dense<0.000000e+00> : vector<8x32xf32>
    %2 = tpu.matmul %0, %1, %cst {dimension_numbers = #tpu.dot_dimension_numbers<[1], [1], [0], [0], [0, 0, 1, 0], [], []>} : vector<8x16xf32>, vector<32x16xf32>, vector<8x32xf32> -> vector<8x32xf32>
    %3 = tpu.concatenate %0, %2 in 1 : vector<8x16xf32>, vector<8x32xf32> -> vector<8x48xf32>
    %c0_3 = arith.constant 0 : index
    %c0_4 = arith.constant 0 : index
    %4 = vector.load %arg3[%c0_3, %c0_4] : memref<8x48xf32, #tpu.memory_space<vmem>>, vector<8x48xf32>
    tpu.vector_store %arg3[%c0_3, %c0_4], %3 {strides = array<i32>} : memref<8x48xf32, #tpu.memory_space<vmem>>, vector<8x48xf32>,
    return
  }
  func.func @transform_0(%arg0: i32) -> (i32, i32) {
    %c0_i32 = arith.constant 0 : i32
    %c0_i32_0 = arith.constant 0 : i32
    return %arg0, %c0_i32 : i32, i32
  }
  func.func @transform_1(%arg0: i32) -> (i32, i32) {
    %c0_i32 = arith.constant 0 : i32
    %c0_i32_0 = arith.constant 0 : i32
    %c0_i32_1 = arith.constant 0 : i32
    return %c0_i32, %c0_i32_0 : i32, i32
  }
  func.func @transform_2(%arg0: i32) -> (i32, i32) {
    %c0_i32 = arith.constant 0 : i32
    %c0_i32_0 = arith.constant 0 : i32
    return %arg0, %c0_i32 : i32, i32
  }
}

module attributes {stable_mosaic.version = 11 : i64} {
  func.func @_z0_kernel(%arg0: i32, %arg1: memref<8x16xf32, #tpu.memory_space<vmem>>, %arg2: memref<32x16xf32, #tpu.memory_space<vmem>>, %arg3: memref<8x48xf32, #tpu.memory_space<vmem>>) attributes {dimension_semantics = [#tpu.dimension_semantics<parallel>], iteration_bounds = array<i64: 1>, scalar_prefetch = 0 : i64, scratch_operands = 0 : i64, tpu.core_type = #tpu.core_type<tc>, window_params = [{transform_indices = @transform_0, window_bounds = array<i64: 8, 16>}, {pipeline_mode = #tpu.pipeline_mode<synchronous>, transform_indices = @transform_1, window_bounds = array<i64: 32, 16>}, {transform_indices = @transform_2, window_bounds = array<i64: 8, 48>}]} {
    %c0 = arith.constant 0 : index
    %c0_0 = arith.constant 0 : index
    %0 = vector.load %arg1[%c0, %c0_0] : memref<8x16xf32, #tpu.memory_space<vmem>>, vector<8x16xf32>
    %c0_1 = arith.constant 0 : index
    %c0_2 = arith.constant 0 : index
    %1 = vector.load %arg2[%c0_1, %c0_2] : memref<32x16xf32, #tpu.memory_space<vmem>>, vector<32x16xf32>
    %cst = arith.constant dense<0.000000e+00> : vector<8x32xf32>
    %2 = tpu.matmul %0, %1, %cst {dimension_numbers = #tpu.dot_dimension_numbers<[1], [1], [0], [0], [0, 0, 1, 0], [], []>} : vector<8x16xf32>, vector<32x16xf32>, vector<8x32xf32> -> vector<8x32xf32>
    %3 = tpu.concatenate %0, %2 in 1 : vector<8x16xf32>, vector<8x32xf32> -> vector<8x48xf32>
    %c0_3 = arith.constant 0 : index
    %c0_4 = arith.constant 0 : index
    %4 = vector.load %arg3[%c0_3, %c0_4] : memref<8x48xf32, #tpu.memory_space<vmem>>, vector<8x48xf32>
    tpu.vector_store %arg3[%c0_3, %c0_4], %3 {strides = array<i32>} : memref<8x48xf32, #tpu.memory_space<vmem>>, vector<8x48xf32>,
    return
  }
  func.func @transform_0(%arg0: i32) -> (i32, i32) {
    %c0_i32 = arith.constant 0 : i32
    %c0_i32_0 = arith.constant 0 : i32
    return %arg0, %c0_i32 : i32, i32
  }
  func.func @transform_1(%arg0: i32) -> (i32, i32) {
    %c0_i32 = arith.constant 0 : i32
    %c0_i32_0 = arith.constant 0 : i32
    %c0_i32_1 = arith.constant 0 : i32
    return %c0_i32, %c0_i32_0 : i32, i32
  }
  func.func @transform_2(%arg0: i32) -> (i32, i32) {
    %c0_i32 = arith.constant 0 : i32
    %c0_i32_0 = arith.constant 0 : i32
    return %arg0, %c0_i32 : i32, i32
  }
}

</mosaic_0001>

<llo_original>
// kernel: tpu_custom_call.1
$region0: #{tpu_custom_call.1}
  #allocation0 [shape = 'u32[]', space=smem, size = 0x4, offset = 0x4, fixed_abs, tag = 'smem constant byte address 0x4 - core index']
  #allocation1 [shape = 'u32[144,128]{1,0:T(1,128)}', space=vmem, size = 0x12000, scoped, tag = 'internal scratch']
  %s0 = inlined_call_operand.vmem [shape: f32[8,16], index: 0, kind: input, shape index: {}]
  %s1 = inlined_call_operand.vmem [shape: f32[32,16], index: 1, kind: input, shape index: {}]
  %s2 = inlined_call_operand.hbm [shape: f32[8,48], index: 2, kind: output, shape index: {}]
  %s3 = sld [smem:[#allocation0]]
  $region18: #{tpu_custom_call.1} parent=0
    _
  %s5 = ssub.s32 1, %s3
  %s6 = scalar_select 0, %s5, %s3
  $region1: #{tpu_custom_call.1} parent=0
    #allocation2 [shape = 'u8[4096]{0}', space=vmem, size = 0x1000, scoped, tag = 'output window, operand 0, single buffered']
    #allocation3 [shape = 's32[1]{0}', space=sflag, size = 0x4, scoped, tag = 'scoped memory for tpu_custom_call.1']
    %7 = vsyncpa [#allocation3], 0
    // Predicated region
    $region2: #{tpu_custom_call.1} parent=1 // pred_check
      _
    $region3: #{tpu_custom_call.1} parent=1 // pred_check_branch
      %9 = sbr.rel (0) target = $region5
    $region4: #{tpu_custom_call.1} parent=1 // pred_region
      _
    $region5: #{tpu_custom_call.1} parent=1 // pred_fallthru
      _
    // Predicated region
    $region6: #{tpu_custom_call.1} parent=1 // pred_check
      _
    $region7: #{tpu_custom_call.1} parent=1 // pred_check_branch
      %11 = sbr.rel (0) target = $region9
    $region8: #{tpu_custom_call.1} parent=1 // pred_region
      _
    $region9: #{tpu_custom_call.1} parent=1 // pred_fallthru
      _
    %v12 = vld [vmem:[%s0] sm:$0xff]
    %v13 = vld [vmem:[%s1] sm:$0xff]
    %v14 = vld [vmem:[%s1 + $0x8] sm:$0xff]
    %v15 = vld [vmem:[%s1 + $0x10] sm:$0xff]
    %v16 = vld [vmem:[%s1 + $0x18] sm:$0xff]
    %vm17 = vcmask 130048
    %v19 = vsel %vm17, %v12, 0
    %v22 = vsel %vm17, %v13, 0
    %v25 = vsel %vm17, %v14, 0
    %v28 = vsel %vm17, %v15, 0
    %v31 = vsel %vm17, %v16, 0
    %33 = vmatprep.subr.mxu0 0.0
    %34 = vmatpush1.xpose.msra.mxu0 0.0
    %35 = vmatprep.subr.mxu0 0.0
    %36 = vmatpush1.xpose.msra.mxu0 0.0
    %37 = vmatprep.subr.mxu0 0.0
    %38 = vmatpush1.xpose.msra.mxu0 0.0
    %39 = vmatprep.subr.mxu0 0.0
    %40 = vmatpush1.xpose.msra.mxu0 0.0
    %41 = vmatprep.subr.mxu0 0.0
    %42 = vmatpush1.xpose.msra.mxu0 0.0
    %43 = vmatprep.subr.mxu0 0.0
    %44 = vmatpush1.xpose.msra.mxu0 0.0
    %45 = vmatprep.subr.mxu0 0.0
    %46 = vmatpush1.xpose.msra.mxu0 0.0
    %47 = vmatprep.subr.mxu0 0.0
    %48 = vmatpush1.xpose.msra.mxu0 0.0
    %49 = vmatprep.subr.mxu0 0.0
    %50 = vmatpush1.xpose.msra.mxu0 0.0
    %51 = vmatprep.subr.mxu0 0.0
    %52 = vmatpush1.xpose.msra.mxu0 0.0
    %53 = vmatprep.subr.mxu0 0.0
    %54 = vmatpush1.xpose.msra.mxu0 0.0
    %55 = vmatprep.subr.mxu0 0.0
    %56 = vmatpush1.xpose.msra.mxu0 0.0
    %57 = vmatprep.subr.mxu0 0.0
    %58 = vmatpush1.xpose.msra.mxu0 %v31
    %59 = vmatprep.subr.mxu0 0.0
    %60 = vmatpush1.xpose.msra.mxu0 %v28
    %61 = vmatprep.subr.mxu0 0.0
    %62 = vmatpush1.xpose.msra.mxu0 %v25
    %63 = vmatprep.subr.mxu0 0.0
    %64 = vmatpush1.xpose.msra.mxu0 %v22
    %65 = vmatprep.subr.mxu0 0.0
    %66 = vmatpush2.xpose.msra.mxu0 0.0
    %67 = vmatprep.subr.mxu0 0.0
    %68 = vmatpush2.xpose.msra.mxu0 0.0
    %69 = vmatprep.subr.mxu0 0.0
    %70 = vmatpush2.xpose.msra.mxu0 0.0
    %71 = vmatprep.subr.mxu0 0.0
    %72 = vmatpush2.xpose.msra.mxu0 0.0
    %73 = vmatprep.subr.mxu0 0.0
    %74 = vmatpush2.xpose.msra.mxu0 0.0
    %75 = vmatprep.subr.mxu0 0.0
    %76 = vmatpush2.xpose.msra.mxu0 0.0
    %77 = vmatprep.subr.mxu0 0.0
    %78 = vmatpush2.xpose.msra.mxu0 0.0
    %79 = vmatprep.subr.mxu0 0.0
    %80 = vmatpush2.xpose.msra.mxu0 0.0
    %81 = vmatprep.subr.mxu0 0.0
    %82 = vmatpush2.xpose.msra.mxu0 0.0
    %83 = vmatprep.subr.mxu0 0.0
    %84 = vmatpush2.xpose.msra.mxu0 0.0
    %85 = vmatprep.subr.mxu0 0.0
    %86 = vmatpush2.xpose.msra.mxu0 0.0
    %87 = vmatprep.subr.mxu0 0.0
    %88 = vmatpush2.xpose.msra.mxu0 0.0
    %89 = vmatprep.subr.mxu0 0.0
    %90 = vmatpush2.xpose.msra.mxu0 0.0
    %91 = vmatprep.subr.mxu0 0.0
    %92 = vmatpush2.xpose.msra.mxu0 0.0
    %93 = vmatprep.subr.mxu0 0.0
    %94 = vmatpush2.xpose.msra.mxu0 0.0
    %95 = vmatprep.subr.mxu0 0.0
    %96 = vmatpush2.xpose.msra.mxu0 0.0
    %97 = vmatprep.mubr.f32.mxu0 0.0
    %98 = vmatmul.mubr.f32.gmra.mxu0 %v19
    %v99 = vpop.f32.mrf.mxu0
    %v100 = vadd.f32 0.0, %v99
    %v101 = vpop.f32.mrf.mxu0
    %102 = vdwg.mxu0
    %104 = vrot.lane.b32.xlu0 %v100, 16
    %v105 = vpop.permute.xlu0 %104
    %v107 = vsel %vm17, %v12, %v105
    %vm108 = vcmask 392192
    %109 = vst.msk [vmem:[#allocation2] sm:$0xff] %vm108, %v107
    // Predicated region
    $region10: #{tpu_custom_call.1} parent=1 // pred_check
      _
    $region11: #{tpu_custom_call.1} parent=1 // pred_check_branch
      %111 = sbr.rel (0) target = $region13
    $region12: #{tpu_custom_call.1} parent=1 // pred_region
      %s113 = ssub.s32 128, 128
      %114 = vsyncadd [#allocation3], %s113
      %s116 = sshll.u32 [#allocation2], 4
      %s117 = int_to_ptr.vmem [resolvable:$true] %s116
      %119 = dma.vmem_to_hbm [thread:$0]  %s117, 128, %s2, [#allocation3]
    $region13: #{tpu_custom_call.1} parent=1 // pred_fallthru
      _
    // Predicated region
    $region14: #{tpu_custom_call.1} parent=1 // pred_check
      _
    $region15: #{tpu_custom_call.1} parent=1 // pred_check_branch
      %121 = sbr.rel (0) target = $region17
    $region16: #{tpu_custom_call.1} parent=1 // pred_region
      %122 = dma.done [#allocation3], 128
    $region17: #{tpu_custom_call.1} parent=1 // pred_fallthru
      _
    %123 = vsyncpa [#allocation3], 1

// kernel: tpu_custom_call.1
$region0: #{tpu_custom_call.1}
  #allocation0 [shape = 'u32[]', space=smem, size = 0x4, offset = 0x4, fixed_abs, tag = 'smem constant byte address 0x4 - core index']
  #allocation1 [shape = 'u32[144,128]{1,0:T(1,128)}', space=vmem, size = 0x12000, scoped, tag = 'internal scratch']
  %s0 = inlined_call_operand.vmem [shape: f32[8,16], index: 0, kind: input, shape index: {}]
  %s1 = inlined_call_operand.vmem [shape: f32[32,16], index: 1, kind: input, shape index: {}]
  %s2 = inlined_call_operand.hbm [shape: f32[8,48], index: 2, kind: output, shape index: {}]
  %s3 = sld [smem:[#allocation0]]
  $region18: #{tpu_custom_call.1} parent=0
    _
  %s5 = ssub.s32 1, %s3
  %s6 = scalar_select 0, %s5, %s3
  $region1: #{tpu_custom_call.1} parent=0
    #allocation2 [shape = 'u8[4096]{0}', space=vmem, size = 0x1000, scoped, tag = 'output window, operand 0, single buffered']
    #allocation3 [shape = 's32[1]{0}', space=sflag, size = 0x4, scoped, tag = 'scoped memory for tpu_custom_call.1']
    %7 = vsyncpa [#allocation3], 0
    // Predicated region
    $region2: #{tpu_custom_call.1} parent=1 // pred_check
      _
    $region3: #{tpu_custom_call.1} parent=1 // pred_check_branch
      %9 = sbr.rel (0) target = $region5
    $region4: #{tpu_custom_call.1} parent=1 // pred_region
      _
    $region5: #{tpu_custom_call.1} parent=1 // pred_fallthru
      _
    // Predicated region
    $region6: #{tpu_custom_call.1} parent=1 // pred_check
      _
    $region7: #{tpu_custom_call.1} parent=1 // pred_check_branch
      %11 = sbr.rel (0) target = $region9
    $region8: #{tpu_custom_call.1} parent=1 // pred_region
      _
    $region9: #{tpu_custom_call.1} parent=1 // pred_fallthru
      _
    %v12 = vld [vmem:[%s0] sm:$0xff]
    %v13 = vld [vmem:[%s1] sm:$0xff]
    %v14 = vld [vmem:[%s1 + $0x8] sm:$0xff]
    %v15 = vld [vmem:[%s1 + $0x10] sm:$0xff]
    %v16 = vld [vmem:[%s1 + $0x18] sm:$0xff]
    %vm17 = vcmask 130048
    %v19 = vsel %vm17, %v12, 0
    %v22 = vsel %vm17, %v13, 0
    %v25 = vsel %vm17, %v14, 0
    %v28 = vsel %vm17, %v15, 0
    %v31 = vsel %vm17, %v16, 0
    %33 = vmatprep.subr.mxu0 0.0
    %34 = vmatpush1.xpose.msra.mxu0 0.0
    %35 = vmatprep.subr.mxu0 0.0
    %36 = vmatpush1.xpose.msra.mxu0 0.0
    %37 = vmatprep.subr.mxu0 0.0
    %38 = vmatpush1.xpose.msra.mxu0 0.0
    %39 = vmatprep.subr.mxu0 0.0
    %40 = vmatpush1.xpose.msra.mxu0 0.0
    %41 = vmatprep.subr.mxu0 0.0
    %42 = vmatpush1.xpose.msra.mxu0 0.0
    %43 = vmatprep.subr.mxu0 0.0
    %44 = vmatpush1.xpose.msra.mxu0 0.0
    %45 = vmatprep.subr.mxu0 0.0
    %46 = vmatpush1.xpose.msra.mxu0 0.0
    %47 = vmatprep.subr.mxu0 0.0
    %48 = vmatpush1.xpose.msra.mxu0 0.0
    %49 = vmatprep.subr.mxu0 0.0
    %50 = vmatpush1.xpose.msra.mxu0 0.0
    %51 = vmatprep.subr.mxu0 0.0
    %52 = vmatpush1.xpose.msra.mxu0 0.0
    %53 = vmatprep.subr.mxu0 0.0
    %54 = vmatpush1.xpose.msra.mxu0 0.0
    %55 = vmatprep.subr.mxu0 0.0
    %56 = vmatpush1.xpose.msra.mxu0 0.0
    %57 = vmatprep.subr.mxu0 0.0
    %58 = vmatpush1.xpose.msra.mxu0 %v31
    %59 = vmatprep.subr.mxu0 0.0
    %60 = vmatpush1.xpose.msra.mxu0 %v28
    %61 = vmatprep.subr.mxu0 0.0
    %62 = vmatpush1.xpose.msra.mxu0 %v25
    %63 = vmatprep.subr.mxu0 0.0
    %64 = vmatpush1.xpose.msra.mxu0 %v22
    %65 = vmatprep.subr.mxu0 0.0
    %66 = vmatpush2.xpose.msra.mxu0 0.0
    %67 = vmatprep.subr.mxu0 0.0
    %68 = vmatpush2.xpose.msra.mxu0 0.0
    %69 = vmatprep.subr.mxu0 0.0
    %70 = vmatpush2.xpose.msra.mxu0 0.0
    %71 = vmatprep.subr.mxu0 0.0
    %72 = vmatpush2.xpose.msra.mxu0 0.0
    %73 = vmatprep.subr.mxu0 0.0
    %74 = vmatpush2.xpose.msra.mxu0 0.0
    %75 = vmatprep.subr.mxu0 0.0
    %76 = vmatpush2.xpose.msra.mxu0 0.0
    %77 = vmatprep.subr.mxu0 0.0
    %78 = vmatpush2.xpose.msra.mxu0 0.0
    %79 = vmatprep.subr.mxu0 0.0
    %80 = vmatpush2.xpose.msra.mxu0 0.0
    %81 = vmatprep.subr.mxu0 0.0
    %82 = vmatpush2.xpose.msra.mxu0 0.0
    %83 = vmatprep.subr.mxu0 0.0
    %84 = vmatpush2.xpose.msra.mxu0 0.0
    %85 = vmatprep.subr.mxu0 0.0
    %86 = vmatpush2.xpose.msra.mxu0 0.0
    %87 = vmatprep.subr.mxu0 0.0
    %88 = vmatpush2.xpose.msra.mxu0 0.0
    %89 = vmatprep.subr.mxu0 0.0
    %90 = vmatpush2.xpose.msra.mxu0 0.0
    %91 = vmatprep.subr.mxu0 0.0
    %92 = vmatpush2.xpose.msra.mxu0 0.0
    %93 = vmatprep.subr.mxu0 0.0
    %94 = vmatpush2.xpose.msra.mxu0 0.0
    %95 = vmatprep.subr.mxu0 0.0
    %96 = vmatpush2.xpose.msra.mxu0 0.0
    %97 = vmatprep.mubr.f32.mxu0 0.0
    %98 = vmatmul.mubr.f32.gmra.mxu0 %v19
    %v99 = vpop.f32.mrf.mxu0
    %v100 = vadd.f32 0.0, %v99
    %v101 = vpop.f32.mrf.mxu0
    %102 = vdwg.mxu0
    %104 = vrot.lane.b32.xlu0 %v100, 16
    %v105 = vpop.permute.xlu0 %104
    %v107 = vsel %vm17, %v12, %v105
    %vm108 = vcmask 392192
    %109 = vst.msk [vmem:[#allocation2] sm:$0xff] %vm108, %v107
    // Predicated region
    $region10: #{tpu_custom_call.1} parent=1 // pred_check
      _
    $region11: #{tpu_custom_call.1} parent=1 // pred_check_branch
      %111 = sbr.rel (0) target = $region13
    $region12: #{tpu_custom_call.1} parent=1 // pred_region
      %s113 = ssub.s32 128, 128
      %114 = vsyncadd [#allocation3], %s113
      %s116 = sshll.u32 [#allocation2], 4
      %s117 = int_to_ptr.vmem [resolvable:$true] %s116
      %119 = dma.vmem_to_hbm [thread:$0]  %s117, 128, %s2, [#allocation3]
    $region13: #{tpu_custom_call.1} parent=1 // pred_fallthru
      _
    // Predicated region
    $region14: #{tpu_custom_call.1} parent=1 // pred_check
      _
    $region15: #{tpu_custom_call.1} parent=1 // pred_check_branch
      %121 = sbr.rel (0) target = $region17
    $region16: #{tpu_custom_call.1} parent=1 // pred_region
      %122 = dma.done [#allocation3], 128
    $region17: #{tpu_custom_call.1} parent=1 // pred_fallthru
      _
    %123 = vsyncpa [#allocation3], 1

</llo_original>
